<compile_context>
chip_gen: v6e
topology: v6e:2x2x1
jax: 0.10.0
libtpu: 0.0.40
codegen_flags: <defaults>
</compile_context>

<pallas_src>
import functools

import jax
import jax.numpy as jnp
from jax import lax
from jax.experimental import pallas as pl
from jax.experimental.pallas import tpu as pltpu


# --------------------------------------------------------------------------
# Kernels
# --------------------------------------------------------------------------
def _ls_labels_kernel(x_ref, lab_ref, out_ref, *, confidence, smoothing,
                      n_classes):
    """Integer-label path: target is one-hot(labels), built in-kernel."""
    x = x_ref[...].astype(jnp.float32)                 # (tm, C)
    lab = lab_ref[...]                                 # (tm, 1) int32

    # numerically-stable logsumexp along the class (lane) axis
    m = jnp.max(x, axis=-1, keepdims=True)             # (tm, 1)
    shifted = x - m                                    # (tm, C)
    lse = jnp.log(jnp.sum(jnp.exp(shifted), axis=-1, keepdims=True))  # (tm, 1)

    # fused nll + smooth reduction:
    #   loss = conf*(lse - shifted[label]) + smoothing*(lse - mean(shifted))
    #        = lse - sum(shifted * (conf*onehot + smoothing/C))
    cls = lax.broadcasted_iota(jnp.int32, x.shape, 1)  # (tm, C)
    w = jnp.where(cls == lab, confidence, 0.0) + (smoothing / n_classes)
    loss = lse - jnp.sum(shifted * w, axis=-1, keepdims=True)          # (tm, 1)

    out_ref[...] = loss


def _ls_soft_kernel(x_ref, t_ref, out_ref, *, confidence, smoothing,
                    n_classes):
    """General soft-target path (exact original-module semantics)."""
    x = x_ref[...].astype(jnp.float32)                 # (tm, C)
    t = t_ref[...].astype(jnp.float32)                 # (tm, C)

    m = jnp.max(x, axis=-1, keepdims=True)
    shifted = x - m
    lse = jnp.log(jnp.sum(jnp.exp(shifted), axis=-1, keepdims=True))
    logprobs = shifted - lse                           # (tm, C)

    # loss = conf * (-sum(lp*t)) + smoothing * (-mean(lp))
    #      = -sum(lp * (conf*t + smoothing/C))          (single reduction)
    w = confidence * t + (smoothing / n_classes)
    out_ref[...] = -jnp.sum(logprobs * w, axis=-1, keepdims=True)      # (tm, 1)


# --------------------------------------------------------------------------
# Tile-size selection: largest row tile that keeps the double-buffered
# pipeline footprint well under the scoped VMEM limit on all generations
# (v7x has 64 MiB physical / 32 MiB default scoped; budget conservatively).
# --------------------------------------------------------------------------
_VMEM_BUDGET_BYTES = 8 * 1024 * 1024   # per double-buffered input stream set
_MAX_ROW_TILE = 1024                   # keep vreg/VMEM pressure reasonable


def _pick_row_tile(n_rows, bytes_per_row, itemsize, tm=None):
    if tm is not None:
        assert n_rows % tm == 0, "batch must be divisible by row tile"
        return tm
    # bf16 packs 16 rows per sublane-vreg; keep tiles aligned to that.
    step = 16 if itemsize == 2 else 8
    cap = max(step, _VMEM_BUDGET_BYTES // (2 * max(bytes_per_row, 1)))
    cap = min(cap, _MAX_ROW_TILE, n_rows)
    best = None
    t = step
    while t <= cap:
        if n_rows % t == 0:
            best = t
        t += step
    # Fall back to a single full-batch tile (block == full dim is always legal).
    return best if best is not None else n_rows


# --------------------------------------------------------------------------
# Wrappers
# --------------------------------------------------------------------------
def label_smoothing_loss(x, labels, *, smoothing=0.05, tm=None):
    """Mean label-smoothed loss. x: [N, C] logits, labels: [N] int class ids."""
    N, C = x.shape
    labels = labels.reshape(N, 1).astype(jnp.int32)
    confidence = 1.0 - smoothing

    bytes_per_row = C * x.dtype.itemsize + 4           # logits + label per row
    tm = _pick_row_tile(N, bytes_per_row, x.dtype.itemsize, tm=tm)

    kernel = functools.partial(
        _ls_labels_kernel,
        confidence=confidence, smoothing=smoothing, n_classes=C)

    per_row = pl.pallas_call(
        kernel,
        out_shape=jax.ShapeDtypeStruct((N, 1), jnp.float32),
        grid_spec=pltpu.PrefetchScalarGridSpec(
            num_scalar_prefetch=0,
            grid=(N // tm,),
            in_specs=[
                pl.BlockSpec((tm, C), lambda i: (i, 0)),
                pl.BlockSpec((tm, 1), lambda i: (i, 0)),
            ],
            out_specs=pl.BlockSpec((tm, 1), lambda i: (i, 0)),
        ),
        compiler_params=pltpu.CompilerParams(
            dimension_semantics=("parallel",)),      # no cross-step state
    )(x, labels)
    return jnp.mean(per_row)


def label_smoothing_loss_soft(x, target, *, smoothing=0.05, tm=None):
    """Mean label-smoothed loss with an arbitrary soft target [N, C]."""
    N, C = x.shape
    confidence = 1.0 - smoothing

    bytes_per_row = C * (x.dtype.itemsize + target.dtype.itemsize)
    itemsize = min(x.dtype.itemsize, target.dtype.itemsize)
    tm = _pick_row_tile(N, bytes_per_row, itemsize, tm=tm)

    kernel = functools.partial(
        _ls_soft_kernel,
        confidence=confidence, smoothing=smoothing, n_classes=C)

    per_row = pl.pallas_call(
        kernel,
        out_shape=jax.ShapeDtypeStruct((N, 1), jnp.float32),
        grid_spec=pltpu.PrefetchScalarGridSpec(
            num_scalar_prefetch=0,
            grid=(N // tm,),
            in_specs=[
                pl.BlockSpec((tm, C), lambda i: (i, 0)),
                pl.BlockSpec((tm, C), lambda i: (i, 0)),
            ],
            out_specs=pl.BlockSpec((tm, 1), lambda i: (i, 0)),
        ),
        compiler_params=pltpu.CompilerParams(
            dimension_semantics=("parallel",)),
    )(x, target)
    return jnp.mean(per_row)


# --------------------------------------------------------------------------
# Reference & test
# --------------------------------------------------------------------------
def _reference(x, target, smoothing=0.05):
    confidence = 1.0 - smoothing
    x = x.astype(jnp.float32)
    target = target.astype(jnp.float32)
    logprobs = jax.nn.log_softmax(x, axis=-1)
    nll = jnp.sum(-logprobs * target, axis=-1)
    smooth = -jnp.mean(logprobs, axis=-1)
    return jnp.mean(confidence * nll + smoothing * smooth)


if __name__ == "__main__":
    key = jax.random.PRNGKey(0)
    kx, kt = jax.random.split(key)

    N, C = 16, 128  # small batch of logits over 128 classes
    x = jax.random.normal(kx, (N, C), dtype=jnp.float32)
    labels = jax.random.randint(kt, (N,), 0, C)
    target = jax.nn.one_hot(labels, C, dtype=jnp.float32)

    loss_lab = label_smoothing_loss(x, labels, smoothing=0.05)
    loss_soft = label_smoothing_loss_soft(x, target, smoothing=0.05)
    jax.block_until_ready((loss_lab, loss_soft))

    ref = _reference(x, target, smoothing=0.05)
    assert jnp.allclose(loss_lab, ref, atol=1e-5, rtol=1e-5), (loss_lab, ref)
    assert jnp.allclose(loss_soft, ref, atol=1e-5, rtol=1e-5), (loss_soft, ref)

    print("KERNEL_OK")
</pallas_src>

<mosaic_0001>
module attributes {stable_mosaic.version = 11 : i64} {
  func.func @_ls_labels_kernel(%arg0: i32, %arg1: memref<16x128xf32, #tpu.memory_space<vmem>>, %arg2: memref<16x1xi32, #tpu.memory_space<vmem>>, %arg3: memref<16x1xf32, #tpu.memory_space<vmem>>) attributes {dimension_semantics = [#tpu.dimension_semantics<parallel>], iteration_bounds = array<i64: 1>, scalar_prefetch = 0 : i64, scratch_operands = 0 : i64, tpu.core_type = #tpu.core_type<tc>, window_params = [{transform_indices = @transform_0, window_bounds = array<i64: 16, 128>}, {transform_indices = @transform_1, window_bounds = array<i64: 16, 1>}, {transform_indices = @transform_2, window_bounds = array<i64: 16, 1>}]} {
    %c0 = arith.constant 0 : index
    %c0_0 = arith.constant 0 : index
    %0 = vector.load %arg1[%c0, %c0_0] : memref<16x128xf32, #tpu.memory_space<vmem>>, vector<16x128xf32>
    %c0_1 = arith.constant 0 : index
    %c0_2 = arith.constant 0 : index
    %1 = vector.load %arg2[%c0_1, %c0_2] : memref<16x1xi32, #tpu.memory_space<vmem>>, vector<16x1xi32>
    %cst = arith.constant dense<0xFF800000> : vector<16xf32>
    %2 = vector.multi_reduction <maximumf>, %0, %cst [1] : vector<16x128xf32> to vector<16xf32>
    %3 = vector.shape_cast %2 : vector<16xf32> to vector<16x1xf32>
    %4 = vector.broadcast %3 : vector<16x1xf32> to vector<16x128xf32>
    %5 = arith.subf %0, %4 : vector<16x128xf32>
    %6 = math.exp %5 : vector<16x128xf32>
    %cst_3 = arith.constant dense<0.000000e+00> : vector<16xf32>
    %7 = vector.multi_reduction <add>, %6, %cst_3 [1] : vector<16x128xf32> to vector<16xf32>
    %8 = vector.shape_cast %7 : vector<16xf32> to vector<16x1xf32>
    %9 = math.log %8 : vector<16x1xf32>
    %10 = tpu.iota {dimensions = array<i32: 1>} : vector<16x128xi32>
    %11 = vector.broadcast %1 : vector<16x1xi32> to vector<16x128xi32>
    %12 = arith.cmpi eq, %10, %11 : vector<16x128xi32>
    %cst_4 = arith.constant 0.949999988 : f32
    %cst_5 = arith.constant 0.000000e+00 : f32
    %13 = vector.broadcast %cst_4 : f32 to vector<16x128xf32>
    %14 = vector.broadcast %cst_5 : f32 to vector<16x128xf32>
    %15 = arith.select %12, %13, %14 : vector<16x128xi1>, vector<16x128xf32>
    %cst_6 = arith.constant 3.906250e-04 : f32
    %16 = vector.broadcast %cst_6 : f32 to vector<16x128xf32>
    %17 = arith.addf %15, %16 : vector<16x128xf32>
    %18 = arith.mulf %5, %17 : vector<16x128xf32>
    %cst_7 = arith.constant dense<0.000000e+00> : vector<16xf32>
    %19 = vector.multi_reduction <add>, %18, %cst_7 [1] : vector<16x128xf32> to vector<16xf32>
    %20 = vector.shape_cast %19 : vector<16xf32> to vector<16x1xf32>
    %21 = arith.subf %9, %20 : vector<16x1xf32>
    %c0_8 = arith.constant 0 : index
    %c0_9 = arith.constant 0 : index
    %22 = vector.load %arg3[%c0_8, %c0_9] : memref<16x1xf32, #tpu.memory_space<vmem>>, vector<16x1xf32>
    tpu.vector_store %arg3[%c0_8, %c0_9], %21 {strides = array<i32>} : memref<16x1xf32, #tpu.memory_space<vmem>>, vector<16x1xf32>,
    return
  }
  func.func @transform_0(%arg0: i32) -> (i32, i32) {
    %c0_i32 = arith.constant 0 : i32
    %c0_i32_0 = arith.constant 0 : i32
    return %arg0, %c0_i32 : i32, i32
  }
  func.func @transform_1(%arg0: i32) -> (i32, i32) {
    %c0_i32 = arith.constant 0 : i32
    %c0_i32_0 = arith.constant 0 : i32
    return %arg0, %c0_i32 : i32, i32
  }
  func.func @transform_2(%arg0: i32) -> (i32, i32) {
    %c0_i32 = arith.constant 0 : i32
    %c0_i32_0 = arith.constant 0 : i32
    return %arg0, %c0_i32 : i32, i32
  }
}

</mosaic_0001>

<llo_original>
// kernel: tpu_custom_call.1
$region0: #{tpu_custom_call.1}
  #allocation0 [shape = 'u32[]', space=smem, size = 0x4, offset = 0x4, fixed_abs, tag = 'smem constant byte address 0x4 - core index']
  #allocation1 [shape = 'u32[144,128]{1,0:T(1,128)}', space=vmem, size = 0x12000, scoped, tag = 'internal scratch']
  %s0 = inlined_call_operand.vmem [shape: f32[16,128], index: 0, kind: input, shape index: {}]
  %s1 = inlined_call_operand.vmem [shape: s32[16,1], index: 1, kind: input, shape index: {}]
  %s2 = inlined_call_operand.vmem [shape: f32[16,1], index: 2, kind: output, shape index: {}]
  %s3 = sld [smem:[#allocation0]]
  $region18: #{tpu_custom_call.1} parent=0
    _
  %s5 = ssub.s32 1, %s3
  %s6 = scalar_select 0, %s5, %s3
  // Predicated region
  $region2: #{tpu_custom_call.1} parent=0 // pred_check
    _
  $region3: #{tpu_custom_call.1} parent=0 // pred_check_branch
    %8 = sbr.rel (0) target = $region5
  $region4: #{tpu_custom_call.1} parent=0 // pred_region
    _
  $region5: #{tpu_custom_call.1} parent=0 // pred_fallthru
    _
  // Predicated region
  $region6: #{tpu_custom_call.1} parent=0 // pred_check
    _
  $region7: #{tpu_custom_call.1} parent=0 // pred_check_branch
    %10 = sbr.rel (0) target = $region9
  $region8: #{tpu_custom_call.1} parent=0 // pred_region
    _
  $region9: #{tpu_custom_call.1} parent=0 // pred_fallthru
    _
  %v11 = vld [vmem:[%s0] sm:$0xff]
  %v12 = vld [vmem:[%s0 + $0x8] sm:$0xff]
  %v13 = vld [vmem:[%s1] sm:$0xff]
  %v14 = vld [vmem:[%s1 + $0x8] sm:$0xff]
  %15 = vmax.xlane.f32.xlu0 %v11
  %v16 = vpop.xlane.xlu0 %15
  %17 = vmax.xlane.f32.xlu0 %v12
  %v18 = vpop.xlane.xlu0 %17
  %v19 = vsub.f32 %v11, %v16
  %v20 = vsub.f32 %v12, %v18
  %v21 = vmul.f32 %v19, 1.442695
  %v22 = vpow.pop %v21
  %v23 = vmul.f32 %v20, 1.442695
  %v24 = vpow.pop %v23
  %25 = vadd.xlane.f32.xlu0 %v22
  %v26 = vpop.xlane.xlu0 %25
  %27 = vadd.xlane.f32.xlu0 %v24
  %v28 = vpop.xlane.xlu0 %27
  %v29 = vlog2.pop %v26
  %v30 = vmul.f32 %v29, 0.6931472
  %v31 = vlog2.pop %v28
  %v32 = vmul.f32 %v31, 0.6931472
  %v33 = vlaneseq
  %v34 = vand.u32 %v33, 127
  %35 = vset.pattern.permute.xlu0 0
  %36 = vperm.xlu0 %35, %v13
  %v37 = vpop.permute.xlu0 %36
  %38 = vset.pattern.permute.xlu0 0
  %39 = vperm.xlu0 %38, %v14
  %v40 = vpop.permute.xlu0 %39
  %vm41 = vcmp.eq.s32.totalorder %v34, %v37
  %vm42 = vcmp.eq.s32.totalorder %v34, %v40
  %v43 = vsel %vm41, 0.95, 0.0
  %v44 = vsel %vm42, 0.95, 0.0
  %v45 = vadd.f32 %v43, 0.000390625
  %v46 = vadd.f32 %v44, 0.000390625
  %v47 = vmul.f32 %v19, %v45
  %v48 = vmul.f32 %v20, %v46
  %49 = vadd.xlane.f32.xlu0 %v47
  %v50 = vpop.xlane.xlu0 %49
  %51 = vadd.xlane.f32.xlu0 %v48
  %v52 = vpop.xlane.xlu0 %51
  %v53 = vsub.f32 %v30, %v50
  %v54 = vsub.f32 %v32, %v52
  %vm55 = vcmask 7168
  %56 = vst.msk [vmem:[%s2] sm:$0xff] %vm55, %v53
  %57 = vst.msk [vmem:[%s2 + $0x8] sm:$0xff] %vm55, %v54
  // Predicated region
  $region10: #{tpu_custom_call.1} parent=0 // pred_check
    _
  $region11: #{tpu_custom_call.1} parent=0 // pred_check_branch
    %59 = sbr.rel (0) target = $region13
  $region12: #{tpu_custom_call.1} parent=0 // pred_region
    _
  $region13: #{tpu_custom_call.1} parent=0 // pred_fallthru
    _
  // Predicated region
  $region14: #{tpu_custom_call.1} parent=0 // pred_check
    _
  $region15: #{tpu_custom_call.1} parent=0 // pred_check_branch
    %61 = sbr.rel (0) target = $region17
  $region16: #{tpu_custom_call.1} parent=0 // pred_region
    _
  $region17: #{tpu_custom_call.1} parent=0 // pred_fallthru
    _

</llo_original>
